<compile_context>
chip_gen: v6e
topology: v6e:2x2x1
jax: 0.10.0
libtpu: 0.0.40
codegen_flags: <defaults>
</compile_context>

<pallas_src>
import functools

import numpy as np
import jax
import jax.numpy as jnp
from jax.experimental import pallas as pl
from jax.experimental.pallas import tpu as pltpu

KSIZE = 7
PAD = KSIZE // 2


# ----------------------------------------------------------------------------
# Device-dependent tiling / VMEM configuration.
# ----------------------------------------------------------------------------
def _device_config():
    try:
        kind = jax.devices()[0].device_kind.lower()
    except Exception:  # pragma: no cover - defensive
        kind = ""
    if ("v5" in kind) or ("v6" in kind):
        # 128 MiB physical VMEM, single TensorCore per chip.
        return dict(vmem_limit=80 * 1024 * 1024,
                    block_budget=8 * 1024 * 1024,
                    need_two_batch_steps=False)
    # v7x (64 MiB VMEM per TC, 2 TCs) and unknown chips: conservative limit,
    # keep >=2 parallel batch steps so a megacore can split the batch axis.
    return dict(vmem_limit=48 * 1024 * 1024,
                block_budget=6 * 1024 * 1024,
                need_two_batch_steps=True)


def _pick_batch_tile(n, need_two_steps, cap=8):
    """Largest divisor of n (<= cap); optionally keep >= 2 batch grid steps."""
    best = 1
    for tb in range(1, min(n, cap) + 1):
        if n % tb != 0:
            continue
        if need_two_steps and n > 1 and n // tb < 2:
            continue
        best = tb
    return best


def _pick_channel_tile(c, tb, hw, itemsize, budget_bytes, align):
    """Channel tile: whole C if the x block fits the budget, else the largest
    `align`-multiple divisor of C under the budget (align is dtype dependent
    so sub-32-bit dtypes get fully packed sublane tiles)."""
    if tb * c * hw * itemsize <= budget_bytes:
        return c
    best = None
    tc = align
    while tc < c:
        if c % tc == 0 and tb * tc * hw * itemsize <= budget_bytes:
            best = tc
        tc += align
    if best is not None:
        return best
    for tc in range(align, c, align):
        if c % tc == 0:
            return tc
    return c


# ----------------------------------------------------------------------------
# Weight preprocessing (zero-padding validity folded into the weights).
# ----------------------------------------------------------------------------
def _build_conv_matrix(weight, h, w):
    """(2*HW, HW) f32 matrix M with  out = [avg | max] @ M  equal to the
    7x7 'same' zero-padded conv of the 2-channel [avg, max] map."""
    hw = h * w
    wnp = np.asarray(weight, np.float32).reshape(2, KSIZE, KSIZE)
    mat = np.zeros((2 * hw, hw), np.float32)
    oh = np.arange(h).reshape(h, 1)
    ow = np.arange(w).reshape(1, w)
    f = oh * w + ow                                   # (h, w) output flat index
    for kh in range(KSIZE):
        dh = kh - PAD
        for kw in range(KSIZE):
            dw = kw - PAD
            ih = oh + dh
            iw = ow + dw
            valid = (ih >= 0) & (ih < h) & (iw >= 0) & (iw < w)
            g = ih * w + iw                           # (h, w) input flat index
            fv = f[valid]
            gv = g[valid]
            for c in range(2):
                mat[c * hw + gv, fv] += wnp[c, kh, kw]
    return jnp.asarray(mat)


def _build_weight_planes(weight, h, w, tb):
    """(49, 2*tb, HW) f32 masked weight planes for the roll fallback path.
    Rows [0:tb] carry the avg-channel tap weight, rows [tb:2*tb] the
    max-channel tap weight, each zeroed where the shifted read would leave
    the image (reproducing zero 'same' padding)."""
    hw = h * w
    wnp = np.asarray(weight, np.float32).reshape(2, KSIZE, KSIZE)
    hh = np.arange(h).reshape(h, 1)
    ww = np.arange(w).reshape(1, w)
    planes = np.zeros((KSIZE * KSIZE, 2, hw), np.float32)
    for kh in range(KSIZE):
        dh = kh - PAD
        for kw in range(KSIZE):
            dw = kw - PAD
            valid = ((hh + dh >= 0) & (hh + dh < h) &
                     (ww + dw >= 0) & (ww + dw < w)).astype(np.float32)
            t = kh * KSIZE + kw
            planes[t, 0] = wnp[0, kh, kw] * valid.reshape(hw)
            planes[t, 1] = wnp[1, kh, kw] * valid.reshape(hw)
    planes = np.repeat(planes, tb, axis=1)            # (49, 2*tb, hw)
    return jnp.asarray(planes)


# ----------------------------------------------------------------------------
# Kernel.
# ----------------------------------------------------------------------------
def spatial_attention_kernel(w_ref, x_ref, o_ref, sum_ref, max_ref,
                             *, C, H, W, TB, use_matmul):
    hw = H * W
    c_idx = pl.program_id(1)

    @pl.when(c_idx == 0)
    def _init():
        sum_ref[...] = jnp.zeros_like(sum_ref)
        max_ref[...] = jnp.full_like(max_ref, -jnp.inf)

    # Running channel reduction over the 'arbitrary' (last) grid axis.
    # No full-block f32 copy: sum accumulates in f32, max in native dtype and
    # only the (TB, HW) result is cast.
    xb = x_ref[...]                                              # (TB, TC, HW)
    sum_ref[...] = sum_ref[...] + jnp.sum(xb, axis=1, dtype=jnp.float32)
    max_ref[...] = jnp.maximum(max_ref[...],
                               jnp.max(xb, axis=1).astype(jnp.float32))

    @pl.when(c_idx == pl.num_programs(1) - 1)
    def _finalize():
        avg = sum_ref[...] * (1.0 / C)                           # (TB, HW)
        mx = max_ref[...]                                        # (TB, HW)

        if use_matmul:
            # Whole 7x7 conv as one MXU matmul against the masked-weight matrix.
            feat = jnp.concatenate([avg, mx], axis=1)            # (TB, 2*HW)
            out = jnp.dot(feat, w_ref[...],
                          preferred_element_type=jnp.float32)    # (TB, HW)
        else:
            # Roll fallback: avg/max stacked on the sublane axis so every tap
            # costs one XLU roll + one FMA against a stacked masked plane.
            stacked = jnp.concatenate([avg, mx], axis=0)         # (2*TB, HW)
            acc = jnp.zeros_like(stacked)
            for kh in range(KSIZE):
                dh = kh - PAD
                for kw in range(KSIZE):
                    dw = kw - PAD
                    t = kh * KSIZE + kw
                    s = dh * W + dw                              # flat tap offset
                    if s == 0:
                        r = stacked
                    else:
                        r = pltpu.roll(stacked, shift=(-s) % hw, axis=1)
                    acc = acc + w_ref[t] * r
            out = acc[:TB] + acc[TB:]                            # (TB, HW)

        o_ref[:, 0, :] = jax.nn.sigmoid(out).astype(o_ref.dtype)


# ----------------------------------------------------------------------------
# Wrapper.
# ----------------------------------------------------------------------------
def spatial_attention(x, weight, *, use_matmul=None):
    """x: (N, C, H, W); weight: (1, 2, 7, 7) OIHW (bias-free). -> (N, 1, H, W)."""
    N, C, H, W = x.shape
    hw = H * W
    cfg = _device_config()

    if use_matmul is None:
        # Wmat is (2*HW, HW) f32; only use the MXU path while it stays small.
        use_matmul = (2 * hw * hw * 4) <= 8 * 1024 * 1024

    tb = _pick_batch_tile(N, cfg["need_two_batch_steps"])
    align = max(8, 32 // x.dtype.itemsize)            # 8 f32 / 16 bf16 / 32 int8
    tc = _pick_channel_tile(C, tb, hw, x.dtype.itemsize,
                            cfg["block_budget"], align)
    assert N % tb == 0 and C % tc == 0, (N, tb, C, tc)
    grid = (N // tb, C // tc)

    if use_matmul:
        w_arr = _build_conv_matrix(weight, H, W)                  # (2*HW, HW)
        w_spec = pl.BlockSpec((2 * hw, hw), lambda b, c: (0, 0))
    else:
        w_arr = _build_weight_planes(weight, H, W, tb)            # (49, 2*tb, HW)
        w_spec = pl.BlockSpec((KSIZE * KSIZE, 2 * tb, hw),
                              lambda b, c: (0, 0, 0))

    kernel = functools.partial(spatial_attention_kernel,
                               C=C, H=H, W=W, TB=tb, use_matmul=use_matmul)

    out_flat = pl.pallas_call(
        kernel,
        out_shape=jax.ShapeDtypeStruct((N, 1, hw), x.dtype),
        grid_spec=pltpu.PrefetchScalarGridSpec(
            num_scalar_prefetch=0,
            grid=grid,
            in_specs=[
                w_spec,                                            # resident weights
                pl.BlockSpec((tb, tc, hw), lambda b, c: (b, c, 0)),  # activations
            ],
            out_specs=pl.BlockSpec((tb, 1, hw), lambda b, c: (b, 0, 0)),
            scratch_shapes=[
                pltpu.VMEM((tb, hw), jnp.float32),   # running channel sum
                pltpu.VMEM((tb, hw), jnp.float32),   # running channel max
            ],
        ),
        compiler_params=pltpu.CompilerParams(
            dimension_semantics=("parallel", "arbitrary"),
            vmem_limit_bytes=cfg["vmem_limit"],
        ),
    )(w_arr, x.reshape(N, C, hw))

    return out_flat.reshape(N, 1, H, W)


# ----------------------------------------------------------------------------
# Pure-JAX reference.
# ----------------------------------------------------------------------------
def spatial_attention_reference(x, weight):
    avg = jnp.mean(x, axis=1, keepdims=True)
    mx = jnp.max(x, axis=1, keepdims=True)
    feat = jnp.concatenate([avg, mx], axis=1)
    out = jax.lax.conv_general_dilated(
        feat, weight, window_strides=(1, 1),
        padding=((PAD, PAD), (PAD, PAD)),
        dimension_numbers=("NCHW", "OIHW", "NCHW"))
    return jax.nn.sigmoid(out)


if __name__ == "__main__":
    key = jax.random.PRNGKey(0)
    kx, kw = jax.random.split(key)

    N, C, H, W = 2, 4, 16, 16
    x = jax.random.normal(kx, (N, C, H, W), dtype=jnp.float32)

    # Deterministic init matching PyTorch Conv2d default (kaiming_uniform, a=sqrt(5)):
    # uniform(-1/sqrt(fan_in), 1/sqrt(fan_in)), fan_in = 2 * 7 * 7.
    fan_in = 2 * KSIZE * KSIZE
    bound = 1.0 / (fan_in ** 0.5)
    weight = jax.random.uniform(kw, (1, 2, KSIZE, KSIZE),
                                minval=-bound, maxval=bound, dtype=jnp.float32)

    ref = spatial_attention_reference(x, weight)

    # MXU-matmul finalize path (default for small H*W).
    out_mm = jax.block_until_ready(spatial_attention(x, weight, use_matmul=True))
    assert out_mm.shape == (N, 1, H, W), out_mm.shape
    assert jnp.allclose(out_mm, ref, atol=1e-5, rtol=1e-5), \
        float(jnp.max(jnp.abs(out_mm - ref)))

    # Stacked-roll finalize path (fallback for large images) -- validate it too.
    out_roll = jax.block_until_ready(spatial_attention(x, weight, use_matmul=False))
    assert out_roll.shape == (N, 1, H, W), out_roll.shape
    assert jnp.allclose(out_roll, ref, atol=1e-5, rtol=1e-5), \
        float(jnp.max(jnp.abs(out_roll - ref)))

    print("KERNEL_OK")
</pallas_src>

<mosaic_0001>
module attributes {stable_mosaic.version = 11 : i64} {
  func.func @spatial_attention_kernel(%arg0: i32, %arg1: i32, %arg2: memref<512x256xf32, #tpu.memory_space<vmem>>, %arg3: memref<1x4x256xf32, #tpu.memory_space<vmem>>, %arg4: memref<1x1x256xf32, #tpu.memory_space<vmem>>, %arg5: memref<1x256xf32, #tpu.memory_space<vmem>>, %arg6: memref<1x256xf32, #tpu.memory_space<vmem>>) attributes {dimension_semantics = [#tpu.dimension_semantics<parallel>, #tpu.dimension_semantics<arbitrary>], iteration_bounds = array<i64: 2, 1>, scalar_prefetch = 0 : i64, scratch_operands = 2 : i64, tpu.core_type = #tpu.core_type<tc>, window_params = [{pipeline_mode = #tpu.pipeline_mode<synchronous>, transform_indices = @transform_0, window_bounds = array<i64: 512, 256>}, {transform_indices = @transform_1, window_bounds = array<i64: 1, 4, 256>}, {transform_indices = @transform_2, window_bounds = array<i64: 1, 1, 256>}]} {
    %c0_i32 = arith.constant 0 : i32
    %0 = arith.cmpi eq, %arg1, %c0_i32 : i32
    %1 = arith.extui %0 : i1 to i32
    %c0_i32_0 = arith.constant 0 : i32
    %2 = arith.cmpi ne, %1, %c0_i32_0 : i32
    scf.if %2 {
      %cst_14 = arith.constant 0.000000e+00 : f32
      %15 = vector.broadcast %cst_14 : f32 to vector<1x256xf32>
      %c0_15 = arith.constant 0 : index
      %c0_16 = arith.constant 0 : index
      %16 = vector.load %arg5[%c0_15, %c0_16] : memref<1x256xf32, #tpu.memory_space<vmem>>, vector<1x256xf32>
      tpu.vector_store %arg5[%c0_15, %c0_16], %15 {strides = array<i32>} : memref<1x256xf32, #tpu.memory_space<vmem>>, vector<1x256xf32>,
      %cst_17 = arith.constant 0xFF800000 : f32
      %17 = vector.broadcast %cst_17 : f32 to vector<1x256xf32>
      %c0_18 = arith.constant 0 : index
      %c0_19 = arith.constant 0 : index
      %18 = vector.load %arg6[%c0_18, %c0_19] : memref<1x256xf32, #tpu.memory_space<vmem>>, vector<1x256xf32>
      tpu.vector_store %arg6[%c0_18, %c0_19], %17 {strides = array<i32>} : memref<1x256xf32, #tpu.memory_space<vmem>>, vector<1x256xf32>,
    } else {
    }
    %c0 = arith.constant 0 : index
    %c0_1 = arith.constant 0 : index
    %c0_2 = arith.constant 0 : index
    %3 = vector.load %arg3[%c0, %c0_1, %c0_2] : memref<1x4x256xf32, #tpu.memory_space<vmem>>, vector<1x4x256xf32>
    %c0_3 = arith.constant 0 : index
    %c0_4 = arith.constant 0 : index
    %4 = vector.load %arg5[%c0_3, %c0_4] : memref<1x256xf32, #tpu.memory_space<vmem>>, vector<1x256xf32>
    %cst = arith.constant dense<0.000000e+00> : vector<1x256xf32>
    %5 = vector.multi_reduction <add>, %3, %cst [1] : vector<1x4x256xf32> to vector<1x256xf32>
    %6 = arith.addf %4, %5 : vector<1x256xf32>
    %c0_5 = arith.constant 0 : index
    %c0_6 = arith.constant 0 : index
    %7 = vector.load %arg5[%c0_5, %c0_6] : memref<1x256xf32, #tpu.memory_space<vmem>>, vector<1x256xf32>
    tpu.vector_store %arg5[%c0_5, %c0_6], %6 {strides = array<i32>} : memref<1x256xf32, #tpu.memory_space<vmem>>, vector<1x256xf32>,
    %c0_7 = arith.constant 0 : index
    %c0_8 = arith.constant 0 : index
    %8 = vector.load %arg6[%c0_7, %c0_8] : memref<1x256xf32, #tpu.memory_space<vmem>>, vector<1x256xf32>
    %cst_9 = arith.constant dense<0xFF800000> : vector<1x256xf32>
    %9 = vector.multi_reduction <maximumf>, %3, %cst_9 [1] : vector<1x4x256xf32> to vector<1x256xf32>
    %10 = arith.maximumf %8, %9 : vector<1x256xf32>
    %c0_10 = arith.constant 0 : index
    %c0_11 = arith.constant 0 : index
    %11 = vector.load %arg6[%c0_10, %c0_11] : memref<1x256xf32, #tpu.memory_space<vmem>>, vector<1x256xf32>
    tpu.vector_store %arg6[%c0_10, %c0_11], %10 {strides = array<i32>} : memref<1x256xf32, #tpu.memory_space<vmem>>, vector<1x256xf32>,
    %c0_i32_12 = arith.constant 0 : i32
    %12 = arith.cmpi eq, %arg1, %c0_i32_12 : i32
    %13 = arith.extui %12 : i1 to i32
    %c0_i32_13 = arith.constant 0 : i32
    %14 = arith.cmpi ne, %13, %c0_i32_13 : i32
    scf.if %14 {
      %c0_14 = arith.constant 0 : index
      %c0_15 = arith.constant 0 : index
      %15 = vector.load %arg5[%c0_14, %c0_15] : memref<1x256xf32, #tpu.memory_space<vmem>>, vector<1x256xf32>
      %cst_16 = arith.constant 2.500000e-01 : f32
      %16 = vector.broadcast %cst_16 : f32 to vector<1x256xf32>
      %17 = arith.mulf %15, %16 : vector<1x256xf32>
      %c0_17 = arith.constant 0 : index
      %c0_18 = arith.constant 0 : index
      %18 = vector.load %arg6[%c0_17, %c0_18] : memref<1x256xf32, #tpu.memory_space<vmem>>, vector<1x256xf32>
      %19 = tpu.concatenate %17, %18 in 1 : vector<1x256xf32>, vector<1x256xf32> -> vector<1x512xf32>
      %c0_19 = arith.constant 0 : index
      %c0_20 = arith.constant 0 : index
      %20 = vector.load %arg2[%c0_19, %c0_20] : memref<512x256xf32, #tpu.memory_space<vmem>>, vector<512x256xf32>
      %cst_21 = arith.constant dense<0.000000e+00> : vector<1x256xf32>
      %21 = tpu.matmul %19, %20, %cst_21 {dimension_numbers = #tpu.dot_dimension_numbers<[1], [0], [0], [1], [0, 0, 1, 1], [], []>} : vector<1x512xf32>, vector<512x256xf32>, vector<1x256xf32> -> vector<1x256xf32>
      %22 = arith.negf %21 : vector<1x256xf32>
      %23 = math.exp %22 : vector<1x256xf32>
      %cst_22 = arith.constant 1.000000e+00 : f32
      %24 = vector.broadcast %cst_22 : f32 to vector<1x256xf32>
      %25 = arith.addf %24, %23 : vector<1x256xf32>
      %26 = arith.divf %24, %25 : vector<1x256xf32>
      %c0_23 = arith.constant 0 : index
      %c0_24 = arith.constant 0 : index
      %c0_25 = arith.constant 0 : index
      %27 = vector.load %arg4[%c0_23, %c0_24, %c0_25] : memref<1x1x256xf32, #tpu.memory_space<vmem>>, vector<1x1x256xf32>
      %28 = vector.shape_cast %27 : vector<1x1x256xf32> to vector<1x256xf32>
      %29 = vector.shape_cast %26 : vector<1x256xf32> to vector<1x1x256xf32>
      tpu.vector_store %arg4[%c0_23, %c0_24, %c0_25], %29 {strides = array<i32>} : memref<1x1x256xf32, #tpu.memory_space<vmem>>, vector<1x1x256xf32>,
    } else {
    }
    return
  }
  func.func @transform_0(%arg0: i32, %arg1: i32) -> (i32, i32) {
    %c0_i32 = arith.constant 0 : i32
    %c0_i32_0 = arith.constant 0 : i32
    %c0_i32_1 = arith.constant 0 : i32
    return %c0_i32, %c0_i32_0 : i32, i32
  }
  func.func @transform_1(%arg0: i32, %arg1: i32) -> (i32, i32, i32) {
    %c0_i32 = arith.constant 0 : i32
    %c0_i32_0 = arith.constant 0 : i32
    return %arg0, %arg1, %c0_i32 : i32, i32, i32
  }
  func.func @transform_2(%arg0: i32, %arg1: i32) -> (i32, i32, i32) {
    %c0_i32 = arith.constant 0 : i32
    %c0_i32_0 = arith.constant 0 : i32
    %c0_i32_1 = arith.constant 0 : i32
    return %arg0, %c0_i32, %c0_i32_0 : i32, i32, i32
  }
}

</mosaic_0001>

<llo_original>
// kernel: tpu_custom_call.1
$region0: #{tpu_custom_call.1}
  #allocation0 [shape = 'u32[]', space=smem, size = 0x4, offset = 0x4, fixed_abs, tag = 'smem constant byte address 0x4 - core index']
  #allocation1 [shape = 'u32[144,128]{1,0:T(1,128)}', space=vmem, size = 0x12000, scoped, tag = 'internal scratch']
  #allocation2 [shape = 'f32[1,256]{1,0:T(1,128)}', space=vmem, size = 0x400, scoped, tag = 'scratch operand']
  #allocation3 [shape = 'f32[1,256]{1,0:T(1,128)}', space=vmem, size = 0x400, scoped, tag = 'scratch operand']
  %s0 = inlined_call_operand.hbm [shape: f32[512,256], index: 0, kind: input, shape index: {}]
  %s1 = inlined_call_operand.hbm [shape: f32[2,4,256], index: 1, kind: input, shape index: {}]
  %s2 = inlined_call_operand.hbm [shape: f32[2,1,256], index: 2, kind: output, shape index: {}]
  %s3 = sld [smem:[#allocation0]]
  $region57: #{tpu_custom_call.1} parent=0
    _
  %s5 = ssub.s32 1, %s3
  %s6 = scalar_select 0, %s5, %s3
  $region1: #{tpu_custom_call.1} parent=0
    #allocation4 [shape = 'u8[524288]{0}', space=vmem, size = 0x80000, scoped, tag = 'input window, operand 0, single buffered']
    #allocation5 [shape = 's32[2]{0}', space=sflag, size = 0x8, scoped, tag = 'scoped memory for tpu_custom_call.1']
    #allocation6 [shape = 's32[2]{0}', space=sflag, size = 0x8, scoped, tag = 'scoped memory for tpu_custom_call.1']
    #allocation7 [shape = 'u8[8192]{0}', space=vmem, size = 0x2000, scoped, tag = 'input window, operand 1']
    #allocation8 [shape = 's32[2]{0}', space=sflag, size = 0x8, scoped, tag = 'scoped memory for tpu_custom_call.1']
    #allocation9 [shape = 'u8[2048]{0}', space=vmem, size = 0x800, scoped, tag = 'output window, operand 0']
    %7 = vsyncpa [#allocation5], 0
    %8 = vsyncpa [#allocation8], 0
    %s9 = scalar_lea.sflag [#allocation8], 1
    %10 = vsyncpa %s9, 0
    %11 = vsyncpa [#allocation6], 0
    %s12 = scalar_lea.sflag [#allocation6], 1
    %13 = vsyncpa %s12, 0
    loop: start=0, step=1, limit=4
    $region2: #{tpu_custom_call.1} parent=1 // loop_pre_header
      _
    $region3: #{tpu_custom_call.1} parent=1 // loop_header
      %s15 = sphi 0, %s19
      %p16 = scmp.ge.s32.totalorder %s15, 4
      %s22 = sphi 0, %s34
      %s23 = sphi 0, %s30
      %s24 = sphi 0, %s22
      %s25 = sphi 0, %s23
      %s26 = sphi 0, %s24
      %s27 = sphi 0, %s25
      %s35 = sphi 0, %s35
      %s37 = sphi 0, %s35
      %s38 = sphi 0, %s37
      %s52 = sphi 0, %s38
      %s60 = sphi 0, %s62
      %s63 = sphi 0, %s60
      %s64 = sphi 0, %s63
      %s80 = sphi 0, %s64
      %s86 = sphi 0, %s88
      %s89 = sphi 0, %s86
      %s90 = sphi 0, %s89
      %s106 = sphi 0, %s90
    $region4: #{tpu_custom_call.1} parent=1 // loop_header_branch
      %18 = sbr.rel (%p16) target = $region8
    $region5: #{tpu_custom_call.1} parent=1 // loop_body
      %s20 = ssub.s32 %s15, 1
      %s21 = ssub.s32 %s15, 2
      %s28 = sadd.s32 1, %s23
      %p29 = scmp.ge.s32.totalorder %s28, 1
      %s30 = scalar_select %p29, 0, %s28
      %s31 = sadd.s32 1, %s22
      %s32 = scalar_select %p29, %s31, %s22
      %p33 = scmp.ge.s32.totalorder %s32, 2
      %s34 = scalar_select %p33, 0, %s32
      %s36 = sadd.s32 %s35, 1
      %p39 = scmp.eq.s32.totalorder %s15, 1
      %p40 = scmp.ne.s32.totalorder %s35, %s37
      %p41 = scmp.eq.s32.totalorder %s15, 0
      %p42 = por %p40, %p41
      %p43 = scmp.ne.s32.totalorder %s35, %s37
      %p44 = scmp.eq.s32.totalorder %s20, 1
      %p45 = por %p43, %p44
      %p46 = scmp.ne.s32.totalorder %s37, %s38
      %p47 = scmp.eq.s32.totalorder %s20, 0
      %p48 = por %p46, %p47
      %p49 = scmp.ne.s32.totalorder %s37, %s38
      %p50 = scmp.eq.s32.totalorder %s21, 1
      %p51 = por %p49, %p50
      %p53 = scmp.ne.s32.totalorder %s38, %s52
      %p54 = scmp.eq.s32.totalorder %s21, 0
      %p55 = por %p53, %p54
      %s56 = ssub.s32 %s22, %s34
      %s57 = ssub.s32 %s23, %s30
      %s58 = sor.u32 %s56, %s57
      %p59 = scmp.eq.s32.totalorder %s58, 0
      %s61 = sadd.s32 %s60, 1
      %s62 = scalar_select %p59, %s60, %s61
      %p65 = pneg %p59
      %p66 = scmp.eq.s32.totalorder %s15, 1
      %p67 = por %p65, %p66
      %p68 = scmp.ne.s32.totalorder %s60, %s63
      %p69 = scmp.eq.s32.totalorder %s15, 0
      %p70 = por %p68, %p69
      %p71 = scmp.ne.s32.totalorder %s60, %s63
      %p72 = scmp.eq.s32.totalorder %s20, 1
      %p73 = por %p71, %p72
      %p74 = scmp.ne.s32.totalorder %s63, %s64
      %p75 = scmp.eq.s32.totalorder %s20, 0
      %p76 = por %p74, %p75
      %p77 = scmp.ne.s32.totalorder %s63, %s64
      %p78 = scmp.eq.s32.totalorder %s21, 1
      %p79 = por %p77, %p78
      %p81 = scmp.ne.s32.totalorder %s64, %s80
      %p82 = scmp.eq.s32.totalorder %s21, 0
      %p83 = por %p81, %p82
      %s84 = ssub.s32 %s22, %s34
      %p85 = scmp.eq.s32.totalorder %s84, 0
      %s87 = sadd.s32 %s86, 1
      %s88 = scalar_select %p85, %s86, %s87
      %p91 = pneg %p85
      %p92 = scmp.eq.s32.totalorder %s15, 1
      %p93 = por %p91, %p92
      %p94 = scmp.ne.s32.totalorder %s86, %s89
      %p95 = scmp.eq.s32.totalorder %s15, 0
      %p96 = por %p94, %p95
      %p97 = scmp.ne.s32.totalorder %s86, %s89
      %p98 = scmp.eq.s32.totalorder %s20, 1
      %p99 = por %p97, %p98
      %p100 = scmp.ne.s32.totalorder %s89, %s90
      %p101 = scmp.eq.s32.totalorder %s20, 0
      %p102 = por %p100, %p101
      %p103 = scmp.ne.s32.totalorder %s89, %s90
      %p104 = scmp.eq.s32.totalorder %s21, 1
      %p105 = por %p103, %p104
      %p107 = scmp.ne.s32.totalorder %s90, %s106
      %p108 = scmp.eq.s32.totalorder %s21, 0
      %p109 = por %p107, %p108
      %p110 = scmp.le.s32.totalorder 1, %s15
      %p111 = scmp.lt.s32.totalorder %s15, 3
      %p112 = pnand %p110, %p111
      %p113 = pneg %p112
      // Predicated region
      $region9: #{tpu_custom_call.1} parent=5 // pred_check
        _
      $region10: #{tpu_custom_call.1} parent=5 // pred_check_branch
        %115 = sbr.rel (%p112) target = $region12
      $region11: #{tpu_custom_call.1} parent=5 // pred_region
        %s116 = ssub.s32 %s15, 1
        // Predicated region
        $region13: #{tpu_custom_call.1} parent=11 // pred_check
          %p117 = pneg %p48
        $region14: #{tpu_custom_call.1} parent=11 // pred_check_branch
          %119 = sbr.rel (%p117) target = $region16
        $region15: #{tpu_custom_call.1} parent=11 // pred_region
          %s121 = ssub.s32 16384, 16384
          %122 = vsyncadd [#allocation5], %s121
          %s123 = sshll.u32 [#allocation4], 4
          %s124 = int_to_ptr.vmem [resolvable:$true] %s123
          %129 = dma.hbm_to_vmem [thread:$0]  %s0, 16384, %s124, [#allocation5], 256, 256, 16
        $region16: #{tpu_custom_call.1} parent=11 // pred_fallthru
          _
      $region12: #{tpu_custom_call.1} parent=5 // pred_fallthru
        _
      %p130 = scmp.lt.s32.totalorder %s15, 2
      // Predicated region
      $region17: #{tpu_custom_call.1} parent=5 // pred_check
        %p131 = pneg %p130
      $region18: #{tpu_custom_call.1} parent=5 // pred_check_branch
        %133 = sbr.rel (%p131) target = $region20
      $region19: #{tpu_custom_call.1} parent=5 // pred_region
        // Predicated region
        $region21: #{tpu_custom_call.1} parent=19 // pred_check
          %p134 = pneg %p70
        $region22: #{tpu_custom_call.1} parent=19 // pred_check_branch
          %136 = sbr.rel (%p134) target = $region24
        $region23: #{tpu_custom_call.1} parent=19 // pred_region
          %s137 = sand.u32 %s60, 1
          %s138 = scalar_lea.sflag [#allocation8], %s137
          %s139 = sand.u32 %s60, 1
          %s140 = smul.addr %s139, 8
          %s141 = scalar_lea.vmem [#allocation7], %s140
          %s143 = ssub.s32 128, 128
          %144 = vsyncadd %s138, %s143
          %s145 = smul.addr %s23, 2
          %s146 = smul.addr %s22, 2
          %s147 = sadd.s32 %s145, %s146
          %s148 = smul.addr %s147, 64
          %s149 = scalar_lea.hbm %s1, %s148
          %s151 = sshll.u32 %s141, 4
          %s152 = int_to_ptr.vmem [resolvable:$true] %s151
          %154 = dma.hbm_to_vmem [thread:$0]  %s149, 128, %s152, %s138
        $region24: #{tpu_custom_call.1} parent=19 // pred_fallthru
          _
      $region20: #{tpu_custom_call.1} parent=5 // pred_fallthru
        _
      %p155 = scmp.le.s32.totalorder 1, %s15
      %p156 = scmp.lt.s32.totalorder %s15, 3
      %p157 = pnand %p155, %p156
      %p158 = pneg %p157
      // Predicated region
      $region25: #{tpu_custom_call.1} parent=5 // pred_check
        _
      $region26: #{tpu_custom_call.1} parent=5 // pred_check_branch
        %160 = sbr.rel (%p157) target = $region28
      $region27: #{tpu_custom_call.1} parent=5 // pred_region
        %s161 = ssub.s32 %s15, 1
        // Predicated region
        $region29: #{tpu_custom_call.1} parent=27 // pred_check
          %p162 = pneg %p48
        $region30: #{tpu_custom_call.1} parent=27 // pred_check_branch
          %164 = sbr.rel (%p162) target = $region32
        $region31: #{tpu_custom_call.1} parent=27 // pred_region
          %165 = dma.done [#allocation5], 16384
        $region32: #{tpu_custom_call.1} parent=27 // pred_fallthru
          _
        %s166 = sand.u32 %s63, 1
        %s167 = scalar_lea.sflag [#allocation8], %s166
        %s168 = sand.u32 %s63, 1
        %s169 = smul.addr %s168, 8
        %s170 = scalar_lea.vmem [#allocation7], %s169
        // Predicated region
        $region33: #{tpu_custom_call.1} parent=27 // pred_check
          %p171 = pneg %p76
        $region34: #{tpu_custom_call.1} parent=27 // pred_check_branch
          %173 = sbr.rel (%p171) target = $region36
        $region35: #{tpu_custom_call.1} parent=27 // pred_region
          %174 = dma.done %s167, 128
        $region36: #{tpu_custom_call.1} parent=27 // pred_fallthru
          _
        %p175 = pneg %p48
        %p176 = pneg %p45
        %s177 = sand.u32 %s63, 1
        %s178 = scalar_lea.sflag [#allocation8], %s177
        %s179 = sand.u32 %s63, 1
        %s180 = smul.addr %s179, 8
        %s181 = scalar_lea.vmem [#allocation7], %s180
        %p182 = pneg %p76
        %p183 = pneg %p73
        %p184 = pneg %p102
        %p185 = pneg %p99
        %s186 = sand.u32 %s89, 1
        %s187 = scalar_lea.sflag [#allocation6], %s186
        %s188 = sand.u32 %s89, 1
        %s189 = smul.addr %s188, 2
        %s190 = scalar_lea.vmem [#allocation9], %s189
        %p191 = scmp.eq.s32.totalorder %s25, 0
        // Predicated region
        $region37: #{tpu_custom_call.1} parent=27 // pred_check
          %p192 = pneg %p191
        $region38: #{tpu_custom_call.1} parent=27 // pred_check_branch
          %194 = sbr.rel (%p192) target = $region40
        $region39: #{tpu_custom_call.1} parent=27 // pred_region
          %v195 = vlaneseq
          %vm196 = vcmp.ge.s32.totalorder %v195, 0
          %vm197 = vcmp.lt.s32.totalorder %v195, 256
          %vm198 = vmand %vm196, %vm197
          %199 = vst.msk [vmem:[#allocation2] sm:$0x3] %vm198, 0.0
          %200 = vst.msk [vmem:[#allocation3] sm:$0x3] %vm198, -inf
        $region40: #{tpu_custom_call.1} parent=27 // pred_fallthru
          _
        %v201 = vld [vmem:[%s170] sm:$0xff]
        %v202 = vld [vmem:[#allocation2] sm:$0x3]
        %v204 = vcombine.high %v201, %v201
        %vm206 = vcmask 1043456
        %v207 = vsel %vm206, %v201, 0.0
        %v208 = vrot.slane %v207, 4
        %v209 = vadd.f32 %v207, %v208
        %v210 = vrot.slane %v209, 2
        %v211 = vadd.f32 %v209, %v210
        %v212 = vrot.slane %v211, 1
        %v213 = vadd.f32 %v211, %v212
        %v214 = vsel %vm206, %v204, 0.0
        %v215 = vrot.slane %v214, 4
        %v216 = vadd.f32 %v214, %v215
        %v217 = vrot.slane %v216, 2
        %v218 = vadd.f32 %v216, %v217
        %v219 = vrot.slane %v218, 1
        %v220 = vadd.f32 %v218, %v219
        %v223 = vcombine.low %v213, %v220
        %v225 = vunpack.c.l.s4 1966171168
        %v226 = vunpack.c.0.s8 %v225
        %v227 = vlaneseq
        %v228 = vshrl.u32 %v227, 7
        %v229 = vsub.s32 %v226, %v228
        %v230 = vrot.slane %v223, %v229
        %v232 = vunpack.c.l.s4 1966171168
        %v233 = vunpack.c.0.s8 %v232
        %v234 = vlaneseq
        %v235 = vshrl.u32 %v234, 7
        %v236 = vsub.s32 %v233, %v235
        %v237 = vrot.slane %v230, %v236
        %v239 = vadd.f32 %v202, %v237
        %v240 = vlaneseq
        %vm241 = vcmp.ge.s32.totalorder %v240, 0
        %vm242 = vcmp.lt.s32.totalorder %v240, 256
        %vm243 = vmand %vm241, %vm242
        %244 = vst.msk [vmem:[#allocation2] sm:$0x3] %vm243, %v239
        %v245 = vld [vmem:[#allocation3] sm:$0x3]
        %v246 = vsel %vm206, %v201, -inf
        %v247 = vrot.slane %v246, 4
        %v248 = vmax.f32 %v246, %v247
        %v249 = vrot.slane %v248, 2
        %v250 = vmax.f32 %v248, %v249
        %v251 = vrot.slane %v250, 1
        %v252 = vmax.f32 %v250, %v251
        %v253 = vsel %vm206, %v204, -inf
        %v254 = vrot.slane %v253, 4
        %v255 = vmax.f32 %v253, %v254
        %v256 = vrot.slane %v255, 2
        %v257 = vmax.f32 %v255, %v256
        %v258 = vrot.slane %v257, 1
        %v259 = vmax.f32 %v257, %v258
        %v262 = vcombine.low %v252, %v259
        %v264 = vunpack.c.l.s4 1966171168
        %v265 = vunpack.c.0.s8 %v264
        %v266 = vlaneseq
        %v267 = vshrl.u32 %v266, 7
        %v268 = vsub.s32 %v265, %v267
        %v269 = vrot.slane %v262, %v268
        %v271 = vunpack.c.l.s4 1966171168
        %v272 = vunpack.c.0.s8 %v271
        %v273 = vlaneseq
        %v274 = vshrl.u32 %v273, 7
        %v275 = vsub.s32 %v272, %v274
        %v276 = vrot.slane %v269, %v275
        %v278 = vmax.f32 %v245, %v276
        %279 = vst.msk [vmem:[#allocation3] sm:$0x3] %vm243, %v278
        // Predicated region
        $region41: #{tpu_custom_call.1} parent=27 // pred_check
          %p280 = pneg %p191
        $region42: #{tpu_custom_call.1} parent=27 // pred_check_branch
          %282 = sbr.rel (%p280) target = $region44
        $region43: #{tpu_custom_call.1} parent=27 // pred_region
          %v283 = vld [vmem:[#allocation2] sm:$0x3]
          %v284 = vmul.f32 %v283, 0.25
          %v285 = vld [vmem:[#allocation3] sm:$0x3]
          %v287 = vlaneseq
          %v288 = vshrl.u32 %v287, 7
          %v289 = vsub.s32 0, %v288
          %v290 = vrot.slane %v284, %v289
          %v291 = vlaneseq
          %v292 = vshrl.u32 %v291, 7
          %v293 = vsub.s32 1, %v292
          %v294 = vrot.slane %v284, %v293
          %v298 = vlaneseq
          %v299 = vshrl.u32 %v298, 7
          %v300 = vsub.s32 0, %v299
          %v301 = vrot.slane %v285, %v300
          %v302 = vlaneseq
          %v303 = vshrl.u32 %v302, 7
          %v304 = vsub.s32 1, %v303
          %v305 = vrot.slane %v285, %v304
          %v308 = vld [vmem:[#allocation4] sm:$0xff]
          %v309 = vld [vmem:[#allocation4 + $0x8] sm:$0xff]
          %v310 = vld [vmem:[#allocation4 + $0x10] sm:$0xff]
          %v311 = vld [vmem:[#allocation4 + $0x18] sm:$0xff]
          %v312 = vld [vmem:[#allocation4 + $0x20] sm:$0xff]
          %v313 = vld [vmem:[#allocation4 + $0x28] sm:$0xff]
          %v314 = vld [vmem:[#allocation4 + $0x30] sm:$0xff]
          %v315 = vld [vmem:[#allocation4 + $0x38] sm:$0xff]
          %v316 = vld [vmem:[#allocation4 + $0x40] sm:$0xff]
          %v317 = vld [vmem:[#allocation4 + $0x48] sm:$0xff]
          %v318 = vld [vmem:[#allocation4 + $0x50] sm:$0xff]
          %v319 = vld [vmem:[#allocation4 + $0x58] sm:$0xff]
          %v320 = vld [vmem:[#allocation4 + $0x60] sm:$0xff]
          %v321 = vld [vmem:[#allocation4 + $0x68] sm:$0xff]
          %v322 = vld [vmem:[#allocation4 + $0x70] sm:$0xff]
          %v323 = vld [vmem:[#allocation4 + $0x78] sm:$0xff]
          %v324 = vld [vmem:[#allocation4 + $0x80] sm:$0xff]
          %v325 = vld [vmem:[#allocation4 + $0x88] sm:$0xff]
          %v326 = vld [vmem:[#allocation4 + $0x90] sm:$0xff]
          %v327 = vld [vmem:[#allocation4 + $0x98] sm:$0xff]
          %v328 = vld [vmem:[#allocation4 + $0xa0] sm:$0xff]
          %v329 = vld [vmem:[#allocation4 + $0xa8] sm:$0xff]
          %v330 = vld [vmem:[#allocation4 + $0xb0] sm:$0xff]
          %v331 = vld [vmem:[#allocation4 + $0xb8] sm:$0xff]
          %v332 = vld [vmem:[#allocation4 + $0xc0] sm:$0xff]
          %v333 = vld [vmem:[#allocation4 + $0xc8] sm:$0xff]
          %v334 = vld [vmem:[#allocation4 + $0xd0] sm:$0xff]
          %v335 = vld [vmem:[#allocation4 + $0xd8] sm:$0xff]
          %v336 = vld [vmem:[#allocation4 + $0xe0] sm:$0xff]
          %v337 = vld [vmem:[#allocation4 + $0xe8] sm:$0xff]
          %v338 = vld [vmem:[#allocation4 + $0xf0] sm:$0xff]
          %v339 = vld [vmem:[#allocation4 + $0xf8] sm:$0xff]
          %v340 = vld [vmem:[#allocation4 + $0x100] sm:$0xff]
          %v341 = vld [vmem:[#allocation4 + $0x108] sm:$0xff]
          %v342 = vld [vmem:[#allocation4 + $0x110] sm:$0xff]
          %v343 = vld [vmem:[#allocation4 + $0x118] sm:$0xff]
          %v344 = vld [vmem:[#allocation4 + $0x120] sm:$0xff]
          %v345 = vld [vmem:[#allocation4 + $0x128] sm:$0xff]
          %v346 = vld [vmem:[#allocation4 + $0x130] sm:$0xff]
          %v347 = vld [vmem:[#allocation4 + $0x138] sm:$0xff]
          %v348 = vld [vmem:[#allocation4 + $0x140] sm:$0xff]
          %v349 = vld [vmem:[#allocation4 + $0x148] sm:$0xff]
          %v350 = vld [vmem:[#allocation4 + $0x150] sm:$0xff]
          %v351 = vld [vmem:[#allocation4 + $0x158] sm:$0xff]
          %v352 = vld [vmem:[#allocation4 + $0x160] sm:$0xff]
          %v353 = vld [vmem:[#allocation4 + $0x168] sm:$0xff]
          %v354 = vld [vmem:[#allocation4 + $0x170] sm:$0xff]
          %v355 = vld [vmem:[#allocation4 + $0x178] sm:$0xff]
          %v356 = vld [vmem:[#allocation4 + $0x180] sm:$0xff]
          %v357 = vld [vmem:[#allocation4 + $0x188] sm:$0xff]
          %v358 = vld [vmem:[#allocation4 + $0x190] sm:$0xff]
          %v359 = vld [vmem:[#allocation4 + $0x198] sm:$0xff]
          %v360 = vld [vmem:[#allocation4 + $0x1a0] sm:$0xff]
          %v361 = vld [vmem:[#allocation4 + $0x1a8] sm:$0xff]
          %v362 = vld [vmem:[#allocation4 + $0x1b0] sm:$0xff]
          %v363 = vld [vmem:[#allocation4 + $0x1b8] sm:$0xff]
          %v364 = vld [vmem:[#allocation4 + $0x1c0] sm:$0xff]
          %v365 = vld [vmem:[#allocation4 + $0x1c8] sm:$0xff]
          %v366 = vld [vmem:[#allocation4 + $0x1d0] sm:$0xff]
          %v367 = vld [vmem:[#allocation4 + $0x1d8] sm:$0xff]
          %v368 = vld [vmem:[#allocation4 + $0x1e0] sm:$0xff]
          %v369 = vld [vmem:[#allocation4 + $0x1e8] sm:$0xff]
          %v370 = vld [vmem:[#allocation4 + $0x1f0] sm:$0xff]
          %v371 = vld [vmem:[#allocation4 + $0x1f8] sm:$0xff]
          %v372 = vld [vmem:[#allocation4 + $0x200] sm:$0xff]
          %v373 = vld [vmem:[#allocation4 + $0x208] sm:$0xff]
          %v374 = vld [vmem:[#allocation4 + $0x210] sm:$0xff]
          %v375 = vld [vmem:[#allocation4 + $0x218] sm:$0xff]
          %v376 = vld [vmem:[#allocation4 + $0x220] sm:$0xff]
          %v377 = vld [vmem:[#allocation4 + $0x228] sm:$0xff]
          %v378 = vld [vmem:[#allocation4 + $0x230] sm:$0xff]
          %v379 = vld [vmem:[#allocation4 + $0x238] sm:$0xff]
          %v380 = vld [vmem:[#allocation4 + $0x240] sm:$0xff]
          %v381 = vld [vmem:[#allocation4 + $0x248] sm:$0xff]
          %v382 = vld [vmem:[#allocation4 + $0x250] sm:$0xff]
          %v383 = vld [vmem:[#allocation4 + $0x258] sm:$0xff]
          %v384 = vld [vmem:[#allocation4 + $0x260] sm:$0xff]
          %v385 = vld [vmem:[#allocation4 + $0x268] sm:$0xff]
          %v386 = vld [vmem:[#allocation4 + $0x270] sm:$0xff]
          %v387 = vld [vmem:[#allocation4 + $0x278] sm:$0xff]
          %v388 = vld [vmem:[#allocation4 + $0x280] sm:$0xff]
          %v389 = vld [vmem:[#allocation4 + $0x288] sm:$0xff]
          %v390 = vld [vmem:[#allocation4 + $0x290] sm:$0xff]
          %v391 = vld [vmem:[#allocation4 + $0x298] sm:$0xff]
          %v392 = vld [vmem:[#allocation4 + $0x2a0] sm:$0xff]
          %v393 = vld [vmem:[#allocation4 + $0x2a8] sm:$0xff]
          %v394 = vld [vmem:[#allocation4 + $0x2b0] sm:$0xff]
          %v395 = vld [vmem:[#allocation4 + $0x2b8] sm:$0xff]
          %v396 = vld [vmem:[#allocation4 + $0x2c0] sm:$0xff]
          %v397 = vld [vmem:[#allocation4 + $0x2c8] sm:$0xff]
          %v398 = vld [vmem:[#allocation4 + $0x2d0] sm:$0xff]
          %v399 = vld [vmem:[#allocation4 + $0x2d8] sm:$0xff]
          %v400 = vld [vmem:[#allocation4 + $0x2e0] sm:$0xff]
          %v401 = vld [vmem:[#allocation4 + $0x2e8] sm:$0xff]
          %v402 = vld [vmem:[#allocation4 + $0x2f0] sm:$0xff]
          %v403 = vld [vmem:[#allocation4 + $0x2f8] sm:$0xff]
          %v404 = vld [vmem:[#allocation4 + $0x300] sm:$0xff]
          %v405 = vld [vmem:[#allocation4 + $0x308] sm:$0xff]
          %v406 = vld [vmem:[#allocation4 + $0x310] sm:$0xff]
          %v407 = vld [vmem:[#allocation4 + $0x318] sm:$0xff]
          %v408 = vld [vmem:[#allocation4 + $0x320] sm:$0xff]
          %v409 = vld [vmem:[#allocation4 + $0x328] sm:$0xff]
          %v410 = vld [vmem:[#allocation4 + $0x330] sm:$0xff]
          %v411 = vld [vmem:[#allocation4 + $0x338] sm:$0xff]
          %v412 = vld [vmem:[#allocation4 + $0x340] sm:$0xff]
          %v413 = vld [vmem:[#allocation4 + $0x348] sm:$0xff]
          %v414 = vld [vmem:[#allocation4 + $0x350] sm:$0xff]
          %v415 = vld [vmem:[#allocation4 + $0x358] sm:$0xff]
          %v416 = vld [vmem:[#allocation4 + $0x360] sm:$0xff]
          %v417 = vld [vmem:[#allocation4 + $0x368] sm:$0xff]
          %v418 = vld [vmem:[#allocation4 + $0x370] sm:$0xff]
          %v419 = vld [vmem:[#allocation4 + $0x378] sm:$0xff]
          %v420 = vld [vmem:[#allocation4 + $0x380] sm:$0xff]
          %v421 = vld [vmem:[#allocation4 + $0x388] sm:$0xff]
          %v422 = vld [vmem:[#allocation4 + $0x390] sm:$0xff]
          %v423 = vld [vmem:[#allocation4 + $0x398] sm:$0xff]
          %v424 = vld [vmem:[#allocation4 + $0x3a0] sm:$0xff]
          %v425 = vld [vmem:[#allocation4 + $0x3a8] sm:$0xff]
          %v426 = vld [vmem:[#allocation4 + $0x3b0] sm:$0xff]
          %v427 = vld [vmem:[#allocation4 + $0x3b8] sm:$0xff]
          %v428 = vld [vmem:[#allocation4 + $0x3c0] sm:$0xff]
          %v429 = vld [vmem:[#allocation4 + $0x3c8] sm:$0xff]
          %v430 = vld [vmem:[#allocation4 + $0x3d0] sm:$0xff]
          %v431 = vld [vmem:[#allocation4 + $0x3d8] sm:$0xff]
          %v432 = vld [vmem:[#allocation4 + $0x3e0] sm:$0xff]
          %v433 = vld [vmem:[#allocation4 + $0x3e8] sm:$0xff]
          %v434 = vld [vmem:[#allocation4 + $0x3f0] sm:$0xff]
          %v435 = vld [vmem:[#allocation4 + $0x3f8] sm:$0xff]
          %436 = vmatprep.subr.mxu0 %v339
          %437 = vmatpush1.msra.mxu0 %v338
          %438 = vmatprep.subr.mxu0 %v337
          %439 = vmatpush1.msra.mxu0 %v336
          %440 = vmatprep.subr.mxu0 %v335
          %441 = vmatpush1.msra.mxu0 %v334
          %442 = vmatprep.subr.mxu0 %v333
          %443 = vmatpush1.msra.mxu0 %v332
          %444 = vmatprep.subr.mxu0 %v331
          %445 = vmatpush1.msra.mxu0 %v330
          %446 = vmatprep.subr.mxu0 %v329
          %447 = vmatpush1.msra.mxu0 %v328
          %448 = vmatprep.subr.mxu0 %v327
          %449 = vmatpush1.msra.mxu0 %v326
          %450 = vmatprep.subr.mxu0 %v325
          %451 = vmatpush1.msra.mxu0 %v324
          %452 = vmatprep.subr.mxu0 %v323
          %453 = vmatpush1.msra.mxu0 %v322
          %454 = vmatprep.subr.mxu0 %v321
          %455 = vmatpush1.msra.mxu0 %v320
          %456 = vmatprep.subr.mxu0 %v319
          %457 = vmatpush1.msra.mxu0 %v318
          %458 = vmatprep.subr.mxu0 %v317
          %459 = vmatpush1.msra.mxu0 %v316
          %460 = vmatprep.subr.mxu0 %v315
          %461 = vmatpush1.msra.mxu0 %v314
          %462 = vmatprep.subr.mxu0 %v313
          %463 = vmatpush1.msra.mxu0 %v312
          %464 = vmatprep.subr.mxu0 %v311
          %465 = vmatpush1.msra.mxu0 %v310
          %466 = vmatprep.subr.mxu0 %v309
          %467 = vmatpush1.msra.mxu0 %v308
          %468 = vmatprep.subr.mxu0 %v371
          %469 = vmatpush2.msra.mxu0 %v370
          %470 = vmatprep.subr.mxu0 %v369
          %471 = vmatpush2.msra.mxu0 %v368
          %472 = vmatprep.subr.mxu0 %v367
          %473 = vmatpush2.msra.mxu0 %v366
          %474 = vmatprep.subr.mxu0 %v365
          %475 = vmatpush2.msra.mxu0 %v364
          %476 = vmatprep.subr.mxu0 %v363
          %477 = vmatpush2.msra.mxu0 %v362
          %478 = vmatprep.subr.mxu0 %v361
          %479 = vmatpush2.msra.mxu0 %v360
          %480 = vmatprep.subr.mxu0 %v359
          %481 = vmatpush2.msra.mxu0 %v358
          %482 = vmatprep.subr.mxu0 %v357
          %483 = vmatpush2.msra.mxu0 %v356
          %484 = vmatprep.subr.mxu0 %v355
          %485 = vmatpush2.msra.mxu0 %v354
          %486 = vmatprep.subr.mxu0 %v353
          %487 = vmatpush2.msra.mxu0 %v352
          %488 = vmatprep.subr.mxu0 %v351
          %489 = vmatpush2.msra.mxu0 %v350
          %490 = vmatprep.subr.mxu0 %v349
          %491 = vmatpush2.msra.mxu0 %v348
          %492 = vmatprep.subr.mxu0 %v347
          %493 = vmatpush2.msra.mxu0 %v346
          %494 = vmatprep.subr.mxu0 %v345
          %495 = vmatpush2.msra.mxu0 %v344
          %496 = vmatprep.subr.mxu0 %v343
          %497 = vmatpush2.msra.mxu0 %v342
          %498 = vmatprep.subr.mxu0 %v341
          %499 = vmatpush2.msra.mxu0 %v340
          %500 = vmatprep.mubr.f32.mxu0 %v294
          %501 = vmatmul.mubr.f32.gmra.mxu0 %v290
          %v502 = vpop.f32.mrf.mxu0
          %v503 = vadd.f32 0.0, %v502
          %v504 = vpop.f32.mrf.mxu0
          %v505 = vadd.f32 0.0, %v504
          %506 = vdwg.mxu0
          %507 = vmatprep.subr.mxu0 %v403
          %508 = vmatpush1.msra.mxu0 %v402
          %509 = vmatprep.subr.mxu0 %v401
          %510 = vmatpush1.msra.mxu0 %v400
          %511 = vmatprep.subr.mxu0 %v399
          %512 = vmatpush1.msra.mxu0 %v398
          %513 = vmatprep.subr.mxu0 %v397
          %514 = vmatpush1.msra.mxu0 %v396
          %515 = vmatprep.subr.mxu0 %v395
          %516 = vmatpush1.msra.mxu0 %v394
          %517 = vmatprep.subr.mxu0 %v393
          %518 = vmatpush1.msra.mxu0 %v392
          %519 = vmatprep.subr.mxu0 %v391
          %520 = vmatpush1.msra.mxu0 %v390
          %521 = vmatprep.subr.mxu0 %v389
          %522 = vmatpush1.msra.mxu0 %v388
          %523 = vmatprep.subr.mxu0 %v387
          %524 = vmatpush1.msra.mxu0 %v386
          %525 = vmatprep.subr.mxu0 %v385
          %526 = vmatpush1.msra.mxu0 %v384
          %527 = vmatprep.subr.mxu0 %v383
          %528 = vmatpush1.msra.mxu0 %v382
          %529 = vmatprep.subr.mxu0 %v381
          %530 = vmatpush1.msra.mxu0 %v380
          %531 = vmatprep.subr.mxu0 %v379
          %532 = vmatpush1.msra.mxu0 %v378
          %533 = vmatprep.subr.mxu0 %v377
          %534 = vmatpush1.msra.mxu0 %v376
          %535 = vmatprep.subr.mxu0 %v375
          %536 = vmatpush1.msra.mxu0 %v374
          %537 = vmatprep.subr.mxu0 %v373
          %538 = vmatpush1.msra.mxu0 %v372
          %539 = vmatprep.subr.mxu0 %v435
          %540 = vmatpush2.msra.mxu0 %v434
          %541 = vmatprep.subr.mxu0 %v433
          %542 = vmatpush2.msra.mxu0 %v432
          %543 = vmatprep.subr.mxu0 %v431
          %544 = vmatpush2.msra.mxu0 %v430
          %545 = vmatprep.subr.mxu0 %v429
          %546 = vmatpush2.msra.mxu0 %v428
          %547 = vmatprep.subr.mxu0 %v427
          %548 = vmatpush2.msra.mxu0 %v426
          %549 = vmatprep.subr.mxu0 %v425
          %550 = vmatpush2.msra.mxu0 %v424
          %551 = vmatprep.subr.mxu0 %v423
          %552 = vmatpush2.msra.mxu0 %v422
          %553 = vmatprep.subr.mxu0 %v421
          %554 = vmatpush2.msra.mxu0 %v420
          %555 = vmatprep.subr.mxu0 %v419
          %556 = vmatpush2.msra.mxu0 %v418
          %557 = vmatprep.subr.mxu0 %v417
          %558 = vmatpush2.msra.mxu0 %v416
          %559 = vmatprep.subr.mxu0 %v415
          %560 = vmatpush2.msra.mxu0 %v414
          %561 = vmatprep.subr.mxu0 %v413
          %562 = vmatpush2.msra.mxu0 %v412
          %563 = vmatprep.subr.mxu0 %v411
          %564 = vmatpush2.msra.mxu0 %v410
          %565 = vmatprep.subr.mxu0 %v409
          %566 = vmatpush2.msra.mxu0 %v408
          %567 = vmatprep.subr.mxu0 %v407
          %568 = vmatpush2.msra.mxu0 %v406
          %569 = vmatprep.subr.mxu0 %v405
          %570 = vmatpush2.msra.mxu0 %v404
          %571 = vmatprep.mubr.f32.mxu0 %v305
          %572 = vmatmul.mubr.f32.gmra.mxu0 %v301
          %v573 = vpop.f32.mrf.mxu0
          %v574 = vadd.f32 %v503, %v573
          %v575 = vpop.f32.mrf.mxu0
          %v576 = vadd.f32 %v505, %v575
          %577 = vdwg.mxu0
          %v578 = vxor.u32 %v574, 2147483648
          %v579 = vxor.u32 %v576, 2147483648
          %v580 = vmul.f32 %v578, 1.442695
          %v581 = vpow.pop %v580
          %v582 = vmul.f32 %v579, 1.442695
          %v583 = vpow.pop %v582
          %v584 = vadd.f32 %v581, 1.0
          %v585 = vadd.f32 %v583, 1.0
          %v586 = vrcp.pop %v584
          %v587 = vmul.f32 1.0, %v586
          %v588 = vrcp.pop %v585
          %v589 = vmul.f32 1.0, %v588
          %v592 = vcombine.low %v587, %v589
          %v594 = vunpack.c.l.s4 1966171168
          %v595 = vunpack.c.0.s8 %v594
          %v596 = vlaneseq
          %v597 = vshrl.u32 %v596, 7
          %v598 = vsub.s32 %v595, %v597
          %v599 = vrot.slane %v592, %v598
          %v601 = vunpack.c.l.s4 1966171168
          %v602 = vunpack.c.0.s8 %v601
          %v603 = vlaneseq
          %v604 = vshrl.u32 %v603, 7
          %v605 = vsub.s32 %v602, %v604
          %v606 = vrot.slane %v599, %v605
          %608 = vst.msk [vmem:[%s190] sm:$0x3] %vm243, %v606
        $region44: #{tpu_custom_call.1} parent=27 // pred_fallthru
          _
        %s609 = sand.u32 %s89, 1
        %s610 = scalar_lea.sflag [#allocation6], %s609
        %s611 = sand.u32 %s89, 1
        %s612 = smul.addr %s611, 2
        %s613 = scalar_lea.vmem [#allocation9], %s612
        // Predicated region
        $region45: #{tpu_custom_call.1} parent=27 // pred_check
          %p614 = pneg %p99
        $region46: #{tpu_custom_call.1} parent=27 // pred_check_branch
          %616 = sbr.rel (%p614) target = $region48
        $region47: #{tpu_custom_call.1} parent=27 // pred_region
          %s618 = ssub.s32 32, 32
          %619 = vsyncadd %s610, %s618
          %s620 = smul.addr %s24, 2
          %s621 = smul.addr %s620, 16
          %s622 = scalar_lea.hbm %s2, %s621
          %s624 = sshll.u32 %s613, 4
          %s625 = int_to_ptr.vmem [resolvable:$true] %s624
          %627 = dma.vmem_to_hbm [thread:$0]  %s625, 32, %s622, %s610
        $region48: #{tpu_custom_call.1} parent=27 // pred_fallthru
          _
      $region28: #{tpu_custom_call.1} parent=5 // pred_fallthru
        _
      %p628 = scmp.le.s32.totalorder 2, %s15
      // Predicated region
      $region49: #{tpu_custom_call.1} parent=5 // pred_check
        %p629 = pneg %p628
      $region50: #{tpu_custom_call.1} parent=5 // pred_check_branch
        %631 = sbr.rel (%p629) target = $region52
      $region51: #{tpu_custom_call.1} parent=5 // pred_region
        %s632 = ssub.s32 %s15, 2
        // Predicated region
        $region53: #{tpu_custom_call.1} parent=51 // pred_check
          %p633 = pneg %p105
        $region54: #{tpu_custom_call.1} parent=51 // pred_check_branch
          %635 = sbr.rel (%p633) target = $region56
        $region55: #{tpu_custom_call.1} parent=51 // pred_region
          %s636 = sand.u32 %s90, 1
          %s637 = scalar_lea.sflag [#allocation6], %s636
          %s638 = sand.u32 %s90, 1
          %s639 = smul.addr %s638, 2
          %s640 = scalar_lea.vmem [#allocation9], %s639
          %641 = dma.done %s637, 32
        $region56: #{tpu_custom_call.1} parent=51 // pred_fallthru
          _
      $region52: #{tpu_custom_call.1} parent=5 // pred_fallthru
        _
    $region6: #{tpu_custom_call.1} parent=1 // loop_footer
      %s19 = sadd.s32 1, %s15
    $region7: #{tpu_custom_call.1} parent=1 // loop_footer_branch
      %14 = sbr.rel target = $region3
    $region8: #{tpu_custom_call.1} parent=1 // loop_exit
      _
    %642 = vsyncpa [#allocation5], 1
    %s643 = scalar_lea.sflag [#allocation5], 1
    %644 = vsyncpa %s643, 1
    %645 = vsyncpa [#allocation8], 1
    %s646 = scalar_lea.sflag [#allocation8], 1
    %647 = vsyncpa %s646, 1
    %648 = vsyncpa [#allocation6], 1
    %s649 = scalar_lea.sflag [#allocation6], 1
    %650 = vsyncpa %s649, 1

</llo_original>
